<compile_context>
chip_gen: v6e
topology: v6e:2x2x1
jax: 0.10.0
libtpu: 0.0.40
codegen_flags: <defaults>
</compile_context>

<pallas_src>
import jax
import jax.numpy as jnp
from jax.experimental import pallas as pl
from jax.experimental.pallas import tpu as pltpu

EPS = 1e-12  # same eps as torch.nn.functional.normalize


# ---------------------------------------------------------------------------
# Kernel body: raw MXU matmul + scale-by-reciprocal-norms + clip.
# ---------------------------------------------------------------------------
def base_head_kernel(f_ref, invf_ref, w_ref, invw_ref, out_ref):
    # (B, D) @ (D, TN) on the MXU with f32 accumulation.
    raw = jnp.dot(f_ref[...], w_ref[...], preferred_element_type=jnp.float32)
    # Pure scale + clip epilogue; no norm recomputation, no f32 weight copy.
    cos = raw * invf_ref[...] * invw_ref[...]          # (B,1) and (1,TN) broadcasts
    out_ref[...] = jnp.clip(cos, -1.0, 1.0).astype(out_ref.dtype)


# ---------------------------------------------------------------------------
# Norm helpers (tiny XLA reduces; inv_w should be precomputed once for inference).
# ---------------------------------------------------------------------------
def inv_row_norms(feats):
    """(B, 1) f32: 1 / max(||feats_row||, eps)."""
    f32 = feats.astype(jnp.float32)
    ssq = jnp.sum(f32 * f32, axis=1, keepdims=True)
    return jax.lax.rsqrt(jnp.maximum(ssq, EPS * EPS))


def inv_col_norms(weight):
    """(1, C) f32: 1 / max(||weight_col||, eps).  Precompute at weight-storage time."""
    w32 = weight.astype(jnp.float32)
    ssq = jnp.sum(w32 * w32, axis=0, keepdims=True)
    return jax.lax.rsqrt(jnp.maximum(ssq, EPS * EPS))


# ---------------------------------------------------------------------------
# Tile-width selection against an explicit VMEM budget (generation-safe).
# ---------------------------------------------------------------------------
def _choose_tn(B, D, C, tn_req, f_bytes, w_bytes, out_bytes, budget_bytes):
    if tn_req >= C:
        return C                                 # full extent block is always legal
    tn = max(128, (min(tn_req, C) // 128) * 128)  # lane-dense (multiple of 128)

    def working_set(t):
        # Conservative: count every block double-buffered + the small norm vectors.
        return (2 * (B * D * f_bytes + D * t * w_bytes + B * t * out_bytes)
                + 4 * (B + C))

    while tn > 128 and working_set(tn) > budget_bytes:
        tn -= 128
    return min(tn, C)


# ---------------------------------------------------------------------------
# Wrapper.
# ---------------------------------------------------------------------------
def base_head(feats, weight, *, inv_w=None, tn=512, out_dtype=jnp.float32,
              weight_buffers=2, vmem_budget_bytes=40 << 20,
              vmem_limit_bytes=48 << 20):
    """cos_theta = clamp(normalize(feats) @ normalize(weight, dim=0), -1, 1).

    feats:  (B, D)   -- kept fully VMEM-resident (tm = B).
    weight: (D, C)   -- streamed from HBM exactly once, in tn-wide column tiles.
    inv_w:  optional precomputed (1, C) f32 reciprocal column norms (inference).
    """
    B, D = feats.shape
    D2, C = weight.shape
    assert D == D2, "feat_dim mismatch between feats and weight"

    # Hoisted norms: (B,1) per call (trivial), (1,C) ideally precomputed once.
    inv_f = inv_row_norms(feats)
    if inv_w is None:
        inv_w = inv_col_norms(weight)
    inv_w = inv_w.reshape(1, C).astype(jnp.float32)

    out_itemsize = jnp.dtype(out_dtype).itemsize
    tn = _choose_tn(B, D, C, tn,
                    feats.dtype.itemsize, weight.dtype.itemsize,
                    out_itemsize, vmem_budget_bytes)
    # TODO(synk): if B*D itself approaches the VMEM budget (very large batches),
    # fall back to tiling B with the batch axis innermost so the weight block
    # index stays constant across it.

    grid = (pl.cdiv(C, tn),)

    w_spec_kwargs = {}
    if weight_buffers != 2:
        # Extra prefetch depth on the long streaming axis (use only if profiling
        # shows exposed weight DMA and VMEM headroom exists).
        w_spec_kwargs["pipeline_mode"] = pl.Buffered(weight_buffers)

    flops = 2 * B * D * C
    bytes_accessed = (feats.size * feats.dtype.itemsize          # read once
                      + weight.size * weight.dtype.itemsize      # read once
                      + B * C * out_itemsize                     # written once
                      + 4 * (B + C))                             # norm vectors

    return pl.pallas_call(
        base_head_kernel,
        out_shape=jax.ShapeDtypeStruct((B, C), out_dtype),
        grid=grid,
        in_specs=[
            pl.BlockSpec((B, D), lambda j: (0, 0)),               # feats: resident
            pl.BlockSpec((B, 1), lambda j: (0, 0)),               # inv_f: resident
            pl.BlockSpec((D, tn), lambda j: (0, j), **w_spec_kwargs),  # weight cols
            pl.BlockSpec((1, tn), lambda j: (0, j)),               # inv_w cols
        ],
        out_specs=pl.BlockSpec((B, tn), lambda j: (0, j)),
        compiler_params=pltpu.CompilerParams(
            dimension_semantics=("parallel",),      # megacore splits class tiles
            vmem_limit_bytes=vmem_limit_bytes,
        ),
        cost_estimate=pl.CostEstimate(
            flops=flops,
            transcendentals=0,                      # rsqrt hoisted to the wrapper
            bytes_accessed=bytes_accessed,
        ),
    )(feats, inv_f, weight, inv_w)


# ---------------------------------------------------------------------------
# Parameter init + pure-JAX reference (for the self-test).
# ---------------------------------------------------------------------------
def init_weight(key, feat_dim, num_class):
    # Mirror: torch.Tensor(feat_dim, num_class).uniform_(-1,1).renorm_(2,1,1e-5).mul_(1e5)
    w = jax.random.uniform(key, (feat_dim, num_class), minval=-1.0, maxval=1.0,
                           dtype=jnp.float32)
    col_norm = jnp.sqrt(jnp.sum(w * w, axis=0, keepdims=True))
    scale = jnp.where(col_norm > 1e-5, 1e-5 / (col_norm + 1e-7), 1.0)
    return w * scale * 1e5


def reference(feats, weight):
    f = feats / jnp.maximum(jnp.linalg.norm(feats, axis=1, keepdims=True), EPS)
    w = weight / jnp.maximum(jnp.linalg.norm(weight, axis=0, keepdims=True), EPS)
    return jnp.clip(f @ w, -1.0, 1.0)


if __name__ == "__main__":
    key = jax.random.PRNGKey(0)
    k_w, k_f = jax.random.split(key)

    batch, feat_dim, num_class = 8, 32, 256
    weight = init_weight(k_w, feat_dim, num_class)
    feats = jax.random.normal(k_f, (batch, feat_dim), dtype=jnp.float32)

    ref = reference(feats, weight)

    # f32 path; tn=128 exercises the multi-tile 1-D grid over classes (grid=(2,)).
    out = base_head(feats, weight, tn=128)
    out = jax.block_until_ready(out)
    assert out.shape == (batch, num_class)
    assert jnp.allclose(out, ref, atol=1e-5, rtol=1e-5), "f32 mismatch vs reference"

    # bf16 operand path (halved weight HBM stream / higher MXU rate), with the
    # weight inverse column norms precomputed once as they would be at
    # parameter-storage time for inference.
    f_bf16 = feats.astype(jnp.bfloat16)
    w_bf16 = weight.astype(jnp.bfloat16)
    inv_w = inv_col_norms(w_bf16)
    out_bf = base_head(f_bf16, w_bf16, inv_w=inv_w, tn=128, out_dtype=jnp.bfloat16)
    out_bf = jax.block_until_ready(out_bf)
    assert out_bf.shape == (batch, num_class)
    assert jnp.allclose(out_bf.astype(jnp.float32), ref, atol=5e-2, rtol=5e-2), \
        "bf16 mismatch vs reference"

    print("KERNEL_OK")
</pallas_src>

<mosaic_0001>
module attributes {stable_mosaic.version = 11 : i64} {
  func.func @base_head_kernel(%arg0: i32, %arg1: memref<8x32xf32, #tpu.memory_space<vmem>>, %arg2: memref<8x1xf32, #tpu.memory_space<vmem>>, %arg3: memref<32x128xf32, #tpu.memory_space<vmem>>, %arg4: memref<1x128xf32, #tpu.memory_space<vmem>>, %arg5: memref<8x128xf32, #tpu.memory_space<vmem>>) attributes {dimension_semantics = [#tpu.dimension_semantics<parallel>], iteration_bounds = array<i64: 2>, scalar_prefetch = 0 : i64, scratch_operands = 0 : i64, tpu.core_type = #tpu.core_type<tc>, window_params = [{pipeline_mode = #tpu.pipeline_mode<synchronous>, transform_indices = @transform_0, window_bounds = array<i64: 8, 32>}, {pipeline_mode = #tpu.pipeline_mode<synchronous>, transform_indices = @transform_1, window_bounds = array<i64: 8, 1>}, {transform_indices = @transform_2, window_bounds = array<i64: 32, 128>}, {transform_indices = @transform_3, window_bounds = array<i64: 1, 128>}, {transform_indices = @transform_4, window_bounds = array<i64: 8, 128>}]} {
    %c0 = arith.constant 0 : index
    %c0_0 = arith.constant 0 : index
    %0 = vector.load %arg1[%c0, %c0_0] : memref<8x32xf32, #tpu.memory_space<vmem>>, vector<8x32xf32>
    %c0_1 = arith.constant 0 : index
    %c0_2 = arith.constant 0 : index
    %1 = vector.load %arg3[%c0_1, %c0_2] : memref<32x128xf32, #tpu.memory_space<vmem>>, vector<32x128xf32>
    %cst = arith.constant dense<0.000000e+00> : vector<8x128xf32>
    %2 = tpu.matmul %0, %1, %cst {dimension_numbers = #tpu.dot_dimension_numbers<[1], [0], [0], [1], [0, 0, 1, 1], [], []>} : vector<8x32xf32>, vector<32x128xf32>, vector<8x128xf32> -> vector<8x128xf32>
    %c0_3 = arith.constant 0 : index
    %c0_4 = arith.constant 0 : index
    %3 = vector.load %arg2[%c0_3, %c0_4] : memref<8x1xf32, #tpu.memory_space<vmem>>, vector<8x1xf32>
    %4 = vector.broadcast %3 : vector<8x1xf32> to vector<8x128xf32>
    %5 = arith.mulf %2, %4 : vector<8x128xf32>
    %c0_5 = arith.constant 0 : index
    %c0_6 = arith.constant 0 : index
    %6 = vector.load %arg4[%c0_5, %c0_6] : memref<1x128xf32, #tpu.memory_space<vmem>>, vector<1x128xf32>
    %7 = vector.broadcast %6 : vector<1x128xf32> to vector<8x128xf32>
    %8 = arith.mulf %5, %7 : vector<8x128xf32>
    %cst_7 = arith.constant -1.000000e+00 : f32
    %cst_8 = arith.constant 1.000000e+00 : f32
    %9 = vector.broadcast %cst_7 : f32 to vector<8x128xf32>
    %10 = arith.maximumf %9, %8 : vector<8x128xf32>
    %11 = vector.broadcast %cst_8 : f32 to vector<8x128xf32>
    %12 = arith.minimumf %11, %10 : vector<8x128xf32>
    %c0_9 = arith.constant 0 : index
    %c0_10 = arith.constant 0 : index
    %13 = vector.load %arg5[%c0_9, %c0_10] : memref<8x128xf32, #tpu.memory_space<vmem>>, vector<8x128xf32>
    tpu.vector_store %arg5[%c0_9, %c0_10], %12 {strides = array<i32>} : memref<8x128xf32, #tpu.memory_space<vmem>>, vector<8x128xf32>,
    return
  }
  func.func @transform_0(%arg0: i32) -> (i32, i32) {
    %c0_i32 = arith.constant 0 : i32
    %c0_i32_0 = arith.constant 0 : i32
    %c0_i32_1 = arith.constant 0 : i32
    return %c0_i32, %c0_i32_0 : i32, i32
  }
  func.func @transform_1(%arg0: i32) -> (i32, i32) {
    %c0_i32 = arith.constant 0 : i32
    %c0_i32_0 = arith.constant 0 : i32
    %c0_i32_1 = arith.constant 0 : i32
    return %c0_i32, %c0_i32_0 : i32, i32
  }
  func.func @transform_2(%arg0: i32) -> (i32, i32) {
    %c0_i32 = arith.constant 0 : i32
    %c0_i32_0 = arith.constant 0 : i32
    return %c0_i32, %arg0 : i32, i32
  }
  func.func @transform_3(%arg0: i32) -> (i32, i32) {
    %c0_i32 = arith.constant 0 : i32
    %c0_i32_0 = arith.constant 0 : i32
    return %c0_i32, %arg0 : i32, i32
  }
  func.func @transform_4(%arg0: i32) -> (i32, i32) {
    %c0_i32 = arith.constant 0 : i32
    %c0_i32_0 = arith.constant 0 : i32
    return %c0_i32, %arg0 : i32, i32
  }
}

</mosaic_0001>

<llo_original>
// kernel: tpu_custom_call.1
$region0: #{tpu_custom_call.1}
  #allocation0 [shape = 'u32[]', space=smem, size = 0x4, offset = 0x4, fixed_abs, tag = 'smem constant byte address 0x4 - core index']
  #allocation1 [shape = 'u32[144,128]{1,0:T(1,128)}', space=vmem, size = 0x12000, scoped, tag = 'internal scratch']
  %s0 = inlined_call_operand.vmem [shape: f32[8,32], index: 0, kind: input, shape index: {}]
  %s1 = inlined_call_operand.vmem [shape: f32[8,1], index: 1, kind: input, shape index: {}]
  %s2 = inlined_call_operand.hbm [shape: f32[32,256], index: 2, kind: input, shape index: {}]
  %s3 = inlined_call_operand.vmem [shape: f32[1,256], index: 3, kind: input, shape index: {}]
  %s4 = inlined_call_operand.hbm [shape: f32[8,256], index: 4, kind: output, shape index: {}]
  %s5 = sld [smem:[#allocation0]]
  $region53: #{tpu_custom_call.1} parent=0
    _
  %s7 = ssub.s32 1, %s5
  %s8 = scalar_select 0, %s7, %s5
  $region1: #{tpu_custom_call.1} parent=0
    #allocation2 [shape = 'u8[32768]{0}', space=vmem, size = 0x8000, scoped, tag = 'input window, operand 2']
    #allocation3 [shape = 's32[2]{0}', space=sflag, size = 0x8, scoped, tag = 'scoped memory for tpu_custom_call.1']
    #allocation4 [shape = 's32[2]{0}', space=sflag, size = 0x8, scoped, tag = 'scoped memory for tpu_custom_call.1']
    #allocation5 [shape = 'u8[8192]{0}', space=vmem, size = 0x2000, scoped, tag = 'output window, operand 0']
    %9 = vsyncpa [#allocation3], 0
    %s10 = scalar_lea.sflag [#allocation3], 1
    %11 = vsyncpa %s10, 0
    %12 = vsyncpa [#allocation4], 0
    %s13 = scalar_lea.sflag [#allocation4], 1
    %14 = vsyncpa %s13, 0
    loop: start=0, step=1, limit=4
    $region2: #{tpu_custom_call.1} parent=1 // loop_pre_header
      _
    $region3: #{tpu_custom_call.1} parent=1 // loop_header
      %s16 = sphi 0, %s20
      %p17 = scmp.ge.s32.totalorder %s16, 4
      %s24 = sphi 0, %s24
      %s26 = sphi 0, %s24
      %s27 = sphi 0, %s26
      %s41 = sphi 0, %s27
      %s45 = sphi 0, %s45
      %s47 = sphi 0, %s45
      %s48 = sphi 0, %s47
      %s62 = sphi 0, %s48
      %s68 = sphi 0, %s70
      %s71 = sphi 0, %s68
      %s72 = sphi 0, %s71
      %s88 = sphi 0, %s72
      %s94 = sphi 0, %s96
      %s97 = sphi 0, %s94
      %s98 = sphi 0, %s97
      %s114 = sphi 0, %s98
      %s120 = sphi 0, %s122
      %s123 = sphi 0, %s120
      %s124 = sphi 0, %s123
      %s140 = sphi 0, %s124
    $region4: #{tpu_custom_call.1} parent=1 // loop_header_branch
      %19 = sbr.rel (%p17) target = $region8
    $region5: #{tpu_custom_call.1} parent=1 // loop_body
      %s21 = ssub.s32 %s16, 1
      %s22 = ssub.s32 %s16, 2
      %s23 = sadd.s32 %s16, 1
      %s25 = sadd.s32 %s24, 1
      %p28 = scmp.eq.s32.totalorder %s16, 1
      %p29 = scmp.ne.s32.totalorder %s24, %s26
      %p30 = scmp.eq.s32.totalorder %s16, 0
      %p31 = por %p29, %p30
      %p32 = scmp.ne.s32.totalorder %s24, %s26
      %p33 = scmp.eq.s32.totalorder %s21, 1
      %p34 = por %p32, %p33
      %p35 = scmp.ne.s32.totalorder %s26, %s27
      %p36 = scmp.eq.s32.totalorder %s21, 0
      %p37 = por %p35, %p36
      %p38 = scmp.ne.s32.totalorder %s26, %s27
      %p39 = scmp.eq.s32.totalorder %s22, 1
      %p40 = por %p38, %p39
      %p42 = scmp.ne.s32.totalorder %s27, %s41
      %p43 = scmp.eq.s32.totalorder %s22, 0
      %p44 = por %p42, %p43
      %s46 = sadd.s32 %s45, 1
      %p49 = scmp.eq.s32.totalorder %s16, 1
      %p50 = scmp.ne.s32.totalorder %s45, %s47
      %p51 = scmp.eq.s32.totalorder %s16, 0
      %p52 = por %p50, %p51
      %p53 = scmp.ne.s32.totalorder %s45, %s47
      %p54 = scmp.eq.s32.totalorder %s21, 1
      %p55 = por %p53, %p54
      %p56 = scmp.ne.s32.totalorder %s47, %s48
      %p57 = scmp.eq.s32.totalorder %s21, 0
      %p58 = por %p56, %p57
      %p59 = scmp.ne.s32.totalorder %s47, %s48
      %p60 = scmp.eq.s32.totalorder %s22, 1
      %p61 = por %p59, %p60
      %p63 = scmp.ne.s32.totalorder %s48, %s62
      %p64 = scmp.eq.s32.totalorder %s22, 0
      %p65 = por %p63, %p64
      %s66 = ssub.s32 %s16, %s23
      %p67 = scmp.eq.s32.totalorder %s66, 0
      %s69 = sadd.s32 %s68, 1
      %s70 = scalar_select %p67, %s68, %s69
      %p73 = pneg %p67
      %p74 = scmp.eq.s32.totalorder %s16, 1
      %p75 = por %p73, %p74
      %p76 = scmp.ne.s32.totalorder %s68, %s71
      %p77 = scmp.eq.s32.totalorder %s16, 0
      %p78 = por %p76, %p77
      %p79 = scmp.ne.s32.totalorder %s68, %s71
      %p80 = scmp.eq.s32.totalorder %s21, 1
      %p81 = por %p79, %p80
      %p82 = scmp.ne.s32.totalorder %s71, %s72
      %p83 = scmp.eq.s32.totalorder %s21, 0
      %p84 = por %p82, %p83
      %p85 = scmp.ne.s32.totalorder %s71, %s72
      %p86 = scmp.eq.s32.totalorder %s22, 1
      %p87 = por %p85, %p86
      %p89 = scmp.ne.s32.totalorder %s72, %s88
      %p90 = scmp.eq.s32.totalorder %s22, 0
      %p91 = por %p89, %p90
      %s92 = ssub.s32 %s16, %s23
      %p93 = scmp.eq.s32.totalorder %s92, 0
      %s95 = sadd.s32 %s94, 1
      %s96 = scalar_select %p93, %s94, %s95
      %p99 = pneg %p93
      %p100 = scmp.eq.s32.totalorder %s16, 1
      %p101 = por %p99, %p100
      %p102 = scmp.ne.s32.totalorder %s94, %s97
      %p103 = scmp.eq.s32.totalorder %s16, 0
      %p104 = por %p102, %p103
      %p105 = scmp.ne.s32.totalorder %s94, %s97
      %p106 = scmp.eq.s32.totalorder %s21, 1
      %p107 = por %p105, %p106
      %p108 = scmp.ne.s32.totalorder %s97, %s98
      %p109 = scmp.eq.s32.totalorder %s21, 0
      %p110 = por %p108, %p109
      %p111 = scmp.ne.s32.totalorder %s97, %s98
      %p112 = scmp.eq.s32.totalorder %s22, 1
      %p113 = por %p111, %p112
      %p115 = scmp.ne.s32.totalorder %s98, %s114
      %p116 = scmp.eq.s32.totalorder %s22, 0
      %p117 = por %p115, %p116
      %s118 = ssub.s32 %s16, %s23
      %p119 = scmp.eq.s32.totalorder %s118, 0
      %s121 = sadd.s32 %s120, 1
      %s122 = scalar_select %p119, %s120, %s121
      %p125 = pneg %p119
      %p126 = scmp.eq.s32.totalorder %s16, 1
      %p127 = por %p125, %p126
      %p128 = scmp.ne.s32.totalorder %s120, %s123
      %p129 = scmp.eq.s32.totalorder %s16, 0
      %p130 = por %p128, %p129
      %p131 = scmp.ne.s32.totalorder %s120, %s123
      %p132 = scmp.eq.s32.totalorder %s21, 1
      %p133 = por %p131, %p132
      %p134 = scmp.ne.s32.totalorder %s123, %s124
      %p135 = scmp.eq.s32.totalorder %s21, 0
      %p136 = por %p134, %p135
      %p137 = scmp.ne.s32.totalorder %s123, %s124
      %p138 = scmp.eq.s32.totalorder %s22, 1
      %p139 = por %p137, %p138
      %p141 = scmp.ne.s32.totalorder %s124, %s140
      %p142 = scmp.eq.s32.totalorder %s22, 0
      %p143 = por %p141, %p142
      %p144 = scmp.le.s32.totalorder 1, %s16
      %p145 = scmp.lt.s32.totalorder %s16, 3
      %p146 = pnand %p144, %p145
      %p147 = pneg %p146
      // Predicated region
      $region9: #{tpu_custom_call.1} parent=5 // pred_check
        _
      $region10: #{tpu_custom_call.1} parent=5 // pred_check_branch
        %149 = sbr.rel (%p146) target = $region12
      $region11: #{tpu_custom_call.1} parent=5 // pred_region
        %s150 = ssub.s32 %s16, 1
        // Predicated region
        $region13: #{tpu_custom_call.1} parent=11 // pred_check
          %p151 = pneg %p37
        $region14: #{tpu_custom_call.1} parent=11 // pred_check_branch
          %153 = sbr.rel (%p151) target = $region16
        $region15: #{tpu_custom_call.1} parent=11 // pred_region
          _
        $region16: #{tpu_custom_call.1} parent=11 // pred_fallthru
          _
        // Predicated region
        $region17: #{tpu_custom_call.1} parent=11 // pred_check
          %p154 = pneg %p58
        $region18: #{tpu_custom_call.1} parent=11 // pred_check_branch
          %156 = sbr.rel (%p154) target = $region20
        $region19: #{tpu_custom_call.1} parent=11 // pred_region
          _
        $region20: #{tpu_custom_call.1} parent=11 // pred_fallthru
          _
      $region12: #{tpu_custom_call.1} parent=5 // pred_fallthru
        _
      %p157 = scmp.lt.s32.totalorder %s16, 2
      // Predicated region
      $region21: #{tpu_custom_call.1} parent=5 // pred_check
        %p158 = pneg %p157
      $region22: #{tpu_custom_call.1} parent=5 // pred_check_branch
        %160 = sbr.rel (%p158) target = $region24
      $region23: #{tpu_custom_call.1} parent=5 // pred_region
        // Predicated region
        $region25: #{tpu_custom_call.1} parent=23 // pred_check
          %p161 = pneg %p78
        $region26: #{tpu_custom_call.1} parent=23 // pred_check_branch
          %163 = sbr.rel (%p161) target = $region28
        $region27: #{tpu_custom_call.1} parent=23 // pred_region
          %s164 = sand.u32 %s68, 1
          %s165 = scalar_lea.sflag [#allocation3], %s164
          %s166 = sand.u32 %s68, 1
          %s167 = smul.addr %s166, 32
          %s168 = scalar_lea.vmem [#allocation2], %s167
          %s170 = ssub.s32 512, 512
          %171 = vsyncadd %s165, %s170
          %s172 = smul.addr %s16, 128
          %s173 = scalar_lea.hbm %s2, %s172
          %s174 = sshll.u32 %s168, 4
          %s175 = int_to_ptr.vmem [resolvable:$true] %s174
          %180 = dma.hbm_to_vmem [thread:$0]  %s173, 512, %s175, %s165, 256, 128, 8
        $region28: #{tpu_custom_call.1} parent=23 // pred_fallthru
          _
        // Predicated region
        $region29: #{tpu_custom_call.1} parent=23 // pred_check
          %p181 = pneg %p104
        $region30: #{tpu_custom_call.1} parent=23 // pred_check_branch
          %183 = sbr.rel (%p181) target = $region32
        $region31: #{tpu_custom_call.1} parent=23 // pred_region
          %p184 = scmp.lt.s32.totalorder %s16, 1
          %s185 = scalar_select %p184, %s16, 1
          %s186 = scalar_lea.vmem %s3, %s185
        $region32: #{tpu_custom_call.1} parent=23 // pred_fallthru
          _
      $region24: #{tpu_custom_call.1} parent=5 // pred_fallthru
        _
      %p187 = scmp.le.s32.totalorder 1, %s16
      %p188 = scmp.lt.s32.totalorder %s16, 3
      %p189 = pnand %p187, %p188
      %p190 = pneg %p189
      // Predicated region
      $region33: #{tpu_custom_call.1} parent=5 // pred_check
        _
      $region34: #{tpu_custom_call.1} parent=5 // pred_check_branch
        %192 = sbr.rel (%p189) target = $region36
      $region35: #{tpu_custom_call.1} parent=5 // pred_region
        %s193 = ssub.s32 %s16, 1
        %s194 = sand.u32 %s71, 1
        %s195 = scalar_lea.sflag [#allocation3], %s194
        %s196 = sand.u32 %s71, 1
        %s197 = smul.addr %s196, 32
        %s198 = scalar_lea.vmem [#allocation2], %s197
        // Predicated region
        $region37: #{tpu_custom_call.1} parent=35 // pred_check
          %p199 = pneg %p84
        $region38: #{tpu_custom_call.1} parent=35 // pred_check_branch
          %201 = sbr.rel (%p199) target = $region40
        $region39: #{tpu_custom_call.1} parent=35 // pred_region
          %202 = dma.done %s195, 512
        $region40: #{tpu_custom_call.1} parent=35 // pred_fallthru
          _
        %p203 = pneg %p37
        %p204 = pneg %p34
        %p205 = pneg %p58
        %p206 = pneg %p55
        %s207 = sand.u32 %s71, 1
        %s208 = scalar_lea.sflag [#allocation3], %s207
        %s209 = sand.u32 %s71, 1
        %s210 = smul.addr %s209, 32
        %s211 = scalar_lea.vmem [#allocation2], %s210
        %p212 = pneg %p84
        %p213 = pneg %p81
        %p214 = scmp.lt.s32.totalorder %s21, 1
        %s215 = scalar_select %p214, %s21, 1
        %s216 = scalar_lea.vmem %s3, %s215
        %p217 = pneg %p110
        %p218 = pneg %p107
        %p219 = pneg %p136
        %p220 = pneg %p133
        %s221 = sand.u32 %s123, 1
        %s222 = scalar_lea.sflag [#allocation4], %s221
        %s223 = sand.u32 %s123, 1
        %s224 = smul.addr %s223, 8
        %s225 = scalar_lea.vmem [#allocation5], %s224
        %p226 = scmp.lt.s32.totalorder %s21, 1
        %s227 = scalar_select %p226, %s21, 1
        %s228 = scalar_lea.vmem %s3, %s227
        %v229 = vld [vmem:[%s0] sm:$0xff]
        %v230 = vld [vmem:[%s198] sm:$0xff]
        %v231 = vld [vmem:[%s198 + $0x8] sm:$0xff]
        %v232 = vld [vmem:[%s198 + $0x10] sm:$0xff]
        %v233 = vld [vmem:[%s198 + $0x18] sm:$0xff]
        %vm234 = vcmask 261120
        %v236 = vsel %vm234, %v229, 0
        %238 = vmatprep.subr.mxu0 0.0
        %239 = vmatpush1.msra.mxu0 0.0
        %240 = vmatprep.subr.mxu0 0.0
        %241 = vmatpush1.msra.mxu0 0.0
        %242 = vmatprep.subr.mxu0 0.0
        %243 = vmatpush1.msra.mxu0 0.0
        %244 = vmatprep.subr.mxu0 0.0
        %245 = vmatpush1.msra.mxu0 0.0
        %246 = vmatprep.subr.mxu0 0.0
        %247 = vmatpush1.msra.mxu0 0.0
        %248 = vmatprep.subr.mxu0 0.0
        %249 = vmatpush1.msra.mxu0 0.0
        %250 = vmatprep.subr.mxu0 0.0
        %251 = vmatpush1.msra.mxu0 0.0
        %252 = vmatprep.subr.mxu0 0.0
        %253 = vmatpush1.msra.mxu0 0.0
        %254 = vmatprep.subr.mxu0 0.0
        %255 = vmatpush1.msra.mxu0 0.0
        %256 = vmatprep.subr.mxu0 0.0
        %257 = vmatpush1.msra.mxu0 0.0
        %258 = vmatprep.subr.mxu0 0.0
        %259 = vmatpush1.msra.mxu0 0.0
        %260 = vmatprep.subr.mxu0 0.0
        %261 = vmatpush1.msra.mxu0 0.0
        %262 = vmatprep.subr.mxu0 0.0
        %263 = vmatpush1.msra.mxu0 %v233
        %264 = vmatprep.subr.mxu0 0.0
        %265 = vmatpush1.msra.mxu0 %v232
        %266 = vmatprep.subr.mxu0 0.0
        %267 = vmatpush1.msra.mxu0 %v231
        %268 = vmatprep.subr.mxu0 0.0
        %269 = vmatpush1.msra.mxu0 %v230
        %270 = vmatprep.subr.mxu0 0.0
        %271 = vmatpush2.msra.mxu0 0.0
        %272 = vmatprep.subr.mxu0 0.0
        %273 = vmatpush2.msra.mxu0 0.0
        %274 = vmatprep.subr.mxu0 0.0
        %275 = vmatpush2.msra.mxu0 0.0
        %276 = vmatprep.subr.mxu0 0.0
        %277 = vmatpush2.msra.mxu0 0.0
        %278 = vmatprep.subr.mxu0 0.0
        %279 = vmatpush2.msra.mxu0 0.0
        %280 = vmatprep.subr.mxu0 0.0
        %281 = vmatpush2.msra.mxu0 0.0
        %282 = vmatprep.subr.mxu0 0.0
        %283 = vmatpush2.msra.mxu0 0.0
        %284 = vmatprep.subr.mxu0 0.0
        %285 = vmatpush2.msra.mxu0 0.0
        %286 = vmatprep.subr.mxu0 0.0
        %287 = vmatpush2.msra.mxu0 0.0
        %288 = vmatprep.subr.mxu0 0.0
        %289 = vmatpush2.msra.mxu0 0.0
        %290 = vmatprep.subr.mxu0 0.0
        %291 = vmatpush2.msra.mxu0 0.0
        %292 = vmatprep.subr.mxu0 0.0
        %293 = vmatpush2.msra.mxu0 0.0
        %294 = vmatprep.subr.mxu0 0.0
        %295 = vmatpush2.msra.mxu0 0.0
        %296 = vmatprep.subr.mxu0 0.0
        %297 = vmatpush2.msra.mxu0 0.0
        %298 = vmatprep.subr.mxu0 0.0
        %299 = vmatpush2.msra.mxu0 0.0
        %300 = vmatprep.subr.mxu0 0.0
        %301 = vmatpush2.msra.mxu0 0.0
        %302 = vmatprep.mubr.f32.mxu0 0.0
        %303 = vmatmul.mubr.f32.gmra.mxu0 %v236
        %v304 = vpop.f32.mrf.mxu0
        %v305 = vadd.f32 0.0, %v304
        %v306 = vpop.f32.mrf.mxu0
        %307 = vdwg.mxu0
        %v308 = vld [vmem:[%s1] sm:$0xff]
        %310 = vset.pattern.permute.xlu0 0
        %311 = vperm.xlu0 %310, %v308
        %v312 = vpop.permute.xlu0 %311
        %v314 = vmul.f32 %v305, %v312
        %v315 = vld [vmem:[%s228] sm:$0x1]
        %v317 = vlaneseq
        %v318 = vshrl.u32 %v317, 7
        %v319 = vsub.s32 0, %v318
        %v320 = vrot.slane %v315, %v319
        %v322 = vmul.f32 %v314, %v320
        %v323 = vmax.f32 %v322, -1.0
        %v324 = vmin.f32 %v323, 1.0
        %325 = vst [vmem:[%s225] sm:$0xff] %v324
        %s326 = sand.u32 %s123, 1
        %s327 = scalar_lea.sflag [#allocation4], %s326
        %s328 = sand.u32 %s123, 1
        %s329 = smul.addr %s328, 8
        %s330 = scalar_lea.vmem [#allocation5], %s329
        // Predicated region
        $region41: #{tpu_custom_call.1} parent=35 // pred_check
          %p331 = pneg %p133
        $region42: #{tpu_custom_call.1} parent=35 // pred_check_branch
          %333 = sbr.rel (%p331) target = $region44
        $region43: #{tpu_custom_call.1} parent=35 // pred_region
          %s335 = ssub.s32 128, 128
          %336 = vsyncadd %s327, %s335
          %s337 = smul.addr %s21, 128
          %s338 = scalar_lea.hbm %s4, %s337
          %s340 = sshll.u32 %s330, 4
          %s341 = int_to_ptr.vmem [resolvable:$true] %s340
          %343 = dma.vmem_to_hbm [thread:$0]  %s341, 128, %s338, %s327
        $region44: #{tpu_custom_call.1} parent=35 // pred_fallthru
          _
      $region36: #{tpu_custom_call.1} parent=5 // pred_fallthru
        _
      %p344 = scmp.le.s32.totalorder 2, %s16
      // Predicated region
      $region45: #{tpu_custom_call.1} parent=5 // pred_check
        %p345 = pneg %p344
      $region46: #{tpu_custom_call.1} parent=5 // pred_check_branch
        %347 = sbr.rel (%p345) target = $region48
      $region47: #{tpu_custom_call.1} parent=5 // pred_region
        %s348 = ssub.s32 %s16, 2
        // Predicated region
        $region49: #{tpu_custom_call.1} parent=47 // pred_check
          %p349 = pneg %p139
        $region50: #{tpu_custom_call.1} parent=47 // pred_check_branch
          %351 = sbr.rel (%p349) target = $region52
        $region51: #{tpu_custom_call.1} parent=47 // pred_region
          %s352 = sand.u32 %s124, 1
          %s353 = scalar_lea.sflag [#allocation4], %s352
          %s354 = sand.u32 %s124, 1
          %s355 = smul.addr %s354, 8
          %s356 = scalar_lea.vmem [#allocation5], %s355
          %357 = dma.done %s353, 128
        $region52: #{tpu_custom_call.1} parent=47 // pred_fallthru
          _
      $region48: #{tpu_custom_call.1} parent=5 // pred_fallthru
        _
    $region6: #{tpu_custom_call.1} parent=1 // loop_footer
      %s20 = sadd.s32 1, %s16
    $region7: #{tpu_custom_call.1} parent=1 // loop_footer_branch
      %15 = sbr.rel target = $region3
    $region8: #{tpu_custom_call.1} parent=1 // loop_exit
      _
    %358 = vsyncpa [#allocation3], 1
    %s359 = scalar_lea.sflag [#allocation3], 1
    %360 = vsyncpa %s359, 1
    %361 = vsyncpa [#allocation4], 1
    %s362 = scalar_lea.sflag [#allocation4], 1
    %363 = vsyncpa %s362, 1

</llo_original>
